<compile_context>
chip_gen: v5e
topology: v5e:2x2
jax: 0.10.0
libtpu: 0.0.40
codegen_flags: <defaults>
</compile_context>

<pallas_src>
import jax
import jax.numpy as jnp
from jax.experimental import pallas as pl
from jax.experimental.pallas import tpu as pltpu


def _round_up(x, m):
    return ((x + m - 1) // m) * m


# ----------------------------- kernels ------------------------------------ #

def _gcn_fused_kernel(a_ref, x_ref, wt_ref, b_ref, o_ref, acc_ref):
    """out[i] = (sum_k A[i,k] @ X[k]) @ Wt + b     (Fin_p <= Fout_p path)."""
    k = pl.program_id(1)

    @pl.when(k == 0)
    def _():
        acc_ref[...] = jnp.zeros_like(acc_ref)

    acc_ref[...] += jnp.dot(a_ref[...], x_ref[...],
                            preferred_element_type=jnp.float32)

    @pl.when(k == pl.num_programs(1) - 1)
    def _():
        out = jnp.dot(acc_ref[...], wt_ref[...],
                      preferred_element_type=jnp.float32)
        o_ref[...] = (out + b_ref[...]).astype(o_ref.dtype)


def _gcn_agg_kernel(a_ref, y_ref, b_ref, o_ref, acc_ref):
    """out[i] = (sum_k A[i,k] @ Y[k]) + b   with Y = X @ Wt precomputed."""
    k = pl.program_id(1)

    @pl.when(k == 0)
    def _():
        acc_ref[...] = jnp.zeros_like(acc_ref)

    acc_ref[...] += jnp.dot(a_ref[...], y_ref[...],
                            preferred_element_type=jnp.float32)

    @pl.when(k == pl.num_programs(1) - 1)
    def _():
        o_ref[...] = (acc_ref[...] + b_ref[...]).astype(o_ref.dtype)


def _xw_kernel(x_ref, wt_ref, y_ref):
    """Y = X @ Wt (row-tiled, Wt resident)."""
    y_ref[...] = jnp.dot(x_ref[...], wt_ref[...],
                         preferred_element_type=jnp.float32).astype(y_ref.dtype)


# ----------------------------- wrapper ------------------------------------ #

_VMEM_LIMIT = 32 * 1024 * 1024   # explicit; well under the 64 MiB v7x budget


def gcn_layer(X, A, W, b):
    """Pallas implementation of GCNLayer.forward(X, A): (A @ X) @ W.T + b."""
    N, fin = X.shape
    fout = W.shape[0]
    assert A.shape == (N, N)
    assert W.shape == (fout, fin)
    assert b.shape == (fout,)
    dtype = X.dtype

    # Lane-dense feature dims: pad both to multiples of 128 (zero padding is
    # a no-op: extra X columns are zero and extra Wt rows are zero).
    fin_p = _round_up(fin, 128)
    fout_p = _round_up(fout, 128)

    # Tile sizes: MXU-friendly 256 when N is large, otherwise one tile that
    # covers the (8-aligned) padded problem.
    if N >= 512:
        tm = tk = 256
    else:
        tm = tk = _round_up(N, 8)
    n_p = _round_up(N, tm)          # also a multiple of tk (tm == tk)

    # One-time wrapper-side layout prep: transpose W, zero-pad everything.
    wt = jnp.zeros((fin_p, fout_p), dtype=dtype).at[:fin, :fout].set(W.T)
    b2 = jnp.zeros((1, fout_p), dtype=dtype).at[:, :fout].set(b.reshape(1, fout))
    a_p = A if n_p == N else jnp.pad(A, ((0, n_p - N), (0, n_p - N)))
    x_p = X
    if n_p != N or fin_p != fin:
        x_p = jnp.pad(X, ((0, n_p - N), (0, fin_p - fin)))

    grid = (n_p // tm, n_p // tk)
    cparams = pltpu.CompilerParams(
        dimension_semantics=("parallel", "arbitrary"),
        vmem_limit_bytes=_VMEM_LIMIT,
    )

    if fin_p <= fout_p:
        # Order 1: accumulate A@X at width fin_p, apply the linear at finalize.
        out_p = pl.pallas_call(
            _gcn_fused_kernel,
            out_shape=jax.ShapeDtypeStruct((n_p, fout_p), dtype),
            grid_spec=pltpu.PrefetchScalarGridSpec(
                num_scalar_prefetch=0,
                grid=grid,
                in_specs=[
                    pl.BlockSpec((tm, tk), lambda i, k: (i, k)),          # A tile
                    pl.BlockSpec((tk, fin_p), lambda i, k: (k, 0)),       # X rows
                    pl.BlockSpec((fin_p, fout_p), lambda i, k: (0, 0)),   # Wt
                    pl.BlockSpec((1, fout_p), lambda i, k: (0, 0)),       # bias
                ],
                out_specs=pl.BlockSpec((tm, fout_p), lambda i, k: (i, 0)),
                scratch_shapes=[pltpu.VMEM((tm, fin_p), jnp.float32)],
            ),
            compiler_params=cparams,
        )(a_p, x_p, wt, b2)
    else:
        # Order 2: the N^2 aggregation is cheaper at width fout_p, so fold the
        # linear into X first (Y = X @ Wt), then out = A @ Y + b.
        y = pl.pallas_call(
            _xw_kernel,
            out_shape=jax.ShapeDtypeStruct((n_p, fout_p), dtype),
            grid_spec=pltpu.PrefetchScalarGridSpec(
                num_scalar_prefetch=0,
                grid=(n_p // tm,),
                in_specs=[
                    pl.BlockSpec((tm, fin_p), lambda i: (i, 0)),
                    pl.BlockSpec((fin_p, fout_p), lambda i: (0, 0)),
                ],
                out_specs=pl.BlockSpec((tm, fout_p), lambda i: (i, 0)),
            ),
            compiler_params=pltpu.CompilerParams(
                dimension_semantics=("parallel",),
                vmem_limit_bytes=_VMEM_LIMIT,
            ),
        )(x_p, wt)

        out_p = pl.pallas_call(
            _gcn_agg_kernel,
            out_shape=jax.ShapeDtypeStruct((n_p, fout_p), dtype),
            grid_spec=pltpu.PrefetchScalarGridSpec(
                num_scalar_prefetch=0,
                grid=grid,
                in_specs=[
                    pl.BlockSpec((tm, tk), lambda i, k: (i, k)),          # A tile
                    pl.BlockSpec((tk, fout_p), lambda i, k: (k, 0)),      # Y rows
                    pl.BlockSpec((1, fout_p), lambda i, k: (0, 0)),       # bias
                ],
                out_specs=pl.BlockSpec((tm, fout_p), lambda i, k: (i, 0)),
                scratch_shapes=[pltpu.VMEM((tm, fout_p), jnp.float32)],
            ),
            compiler_params=cparams,
        )(a_p, y, b2)

    return out_p[:N, :fout]


# ------------------------------ demo -------------------------------------- #

if __name__ == "__main__":
    def make_problem(key, n, fin, fout):
        kx, ka, kw, kb = jax.random.split(key, 4)
        X = jax.random.normal(kx, (n, fin), dtype=jnp.float32)
        A = jax.random.normal(ka, (n, n), dtype=jnp.float32)
        bound = 1.0 / (fin ** 0.5)
        W = jax.random.uniform(kw, (fout, fin), minval=-bound, maxval=bound,
                               dtype=jnp.float32)
        b = jax.random.uniform(kb, (fout,), minval=-bound, maxval=bound,
                               dtype=jnp.float32)
        return X, A, W, b

    def check(name, out, ref):
        # TPU default-precision matmuls plus different tiling/associativity
        # between the kernel and the XLA reference mean results are close but
        # not bit-equal; structural bugs would be orders of magnitude larger.
        rel = float(jnp.max(jnp.abs(out - ref)) /
                    (jnp.max(jnp.abs(ref)) + 1e-12))
        assert out.shape == ref.shape, name
        assert rel < 5e-2, f"{name}: max relative error {rel:.3e}"

    key = jax.random.PRNGKey(0)
    k1, k2, k3 = jax.random.split(key, 3)

    # 1) Module-sized demo (fused path: padded fin <= padded fout).
    X, A, W, b = make_problem(k1, 8, 16, 32)
    out = jax.block_until_ready(gcn_layer(X, A, W, b))
    check("demo", out, (A @ X) @ W.T + b)

    # 2) padded fin > padded fout -> pre-fold (X @ Wt) path, plus row padding.
    X2, A2, W2, b2 = make_problem(k2, 13, 160, 24)
    out2 = jax.block_until_ready(gcn_layer(X2, A2, W2, b2))
    check("prefold", out2, (A2 @ X2) @ W2.T + b2)

    # 3) Multi-tile grid with K accumulation (N=512 -> 2x2 grid of 256-tiles).
    X3, A3, W3, b3 = make_problem(k3, 512, 64, 96)
    out3 = jax.block_until_ready(gcn_layer(X3, A3, W3, b3))
    check("tiled", out3, (A3 @ X3) @ W3.T + b3)

    print("KERNEL_OK")
</pallas_src>

<mosaic_0001>
module attributes {stable_mosaic.version = 11 : i64} {
  func.func @_gcn_fused_kernel(%arg0: i32, %arg1: i32, %arg2: memref<8x8xf32, #tpu.memory_space<vmem>>, %arg3: memref<8x128xf32, #tpu.memory_space<vmem>>, %arg4: memref<128x128xf32, #tpu.memory_space<vmem>>, %arg5: memref<1x128xf32, #tpu.memory_space<vmem>>, %arg6: memref<8x128xf32, #tpu.memory_space<vmem>>, %arg7: memref<8x128xf32, #tpu.memory_space<vmem>>) attributes {dimension_semantics = [#tpu.dimension_semantics<parallel>, #tpu.dimension_semantics<arbitrary>], iteration_bounds = array<i64: 1, 1>, scalar_prefetch = 0 : i64, scratch_operands = 1 : i64, tpu.core_type = #tpu.core_type<tc>, window_params = [{transform_indices = @transform_0, window_bounds = array<i64: 8, 8>}, {transform_indices = @transform_1, window_bounds = array<i64: 8, 128>}, {pipeline_mode = #tpu.pipeline_mode<synchronous>, transform_indices = @transform_2, window_bounds = array<i64: 128, 128>}, {pipeline_mode = #tpu.pipeline_mode<synchronous>, transform_indices = @transform_3, window_bounds = array<i64: 1, 128>}, {transform_indices = @transform_4, window_bounds = array<i64: 8, 128>}]} {
    %c0_i32 = arith.constant 0 : i32
    %0 = arith.cmpi eq, %arg1, %c0_i32 : i32
    %1 = arith.extui %0 : i1 to i32
    %c0_i32_0 = arith.constant 0 : i32
    %2 = arith.cmpi ne, %1, %c0_i32_0 : i32
    scf.if %2 {
      %cst_10 = arith.constant 0.000000e+00 : f32
      %12 = vector.broadcast %cst_10 : f32 to vector<8x128xf32>
      %c0_11 = arith.constant 0 : index
      %c0_12 = arith.constant 0 : index
      %13 = vector.load %arg7[%c0_11, %c0_12] : memref<8x128xf32, #tpu.memory_space<vmem>>, vector<8x128xf32>
      tpu.vector_store %arg7[%c0_11, %c0_12], %12 {strides = array<i32>} : memref<8x128xf32, #tpu.memory_space<vmem>>, vector<8x128xf32>,
    } else {
    }
    %c0 = arith.constant 0 : index
    %c0_1 = arith.constant 0 : index
    %3 = vector.load %arg7[%c0, %c0_1] : memref<8x128xf32, #tpu.memory_space<vmem>>, vector<8x128xf32>
    %c0_2 = arith.constant 0 : index
    %c0_3 = arith.constant 0 : index
    %4 = vector.load %arg2[%c0_2, %c0_3] : memref<8x8xf32, #tpu.memory_space<vmem>>, vector<8x8xf32>
    %c0_4 = arith.constant 0 : index
    %c0_5 = arith.constant 0 : index
    %5 = vector.load %arg3[%c0_4, %c0_5] : memref<8x128xf32, #tpu.memory_space<vmem>>, vector<8x128xf32>
    %cst = arith.constant dense<0.000000e+00> : vector<8x128xf32>
    %6 = tpu.matmul %4, %5, %cst {dimension_numbers = #tpu.dot_dimension_numbers<[1], [0], [0], [1], [0, 0, 1, 1], [], []>} : vector<8x8xf32>, vector<8x128xf32>, vector<8x128xf32> -> vector<8x128xf32>
    %7 = arith.addf %3, %6 : vector<8x128xf32>
    %c0_6 = arith.constant 0 : index
    %c0_7 = arith.constant 0 : index
    %8 = vector.load %arg7[%c0_6, %c0_7] : memref<8x128xf32, #tpu.memory_space<vmem>>, vector<8x128xf32>
    tpu.vector_store %arg7[%c0_6, %c0_7], %7 {strides = array<i32>} : memref<8x128xf32, #tpu.memory_space<vmem>>, vector<8x128xf32>,
    %c0_i32_8 = arith.constant 0 : i32
    %9 = arith.cmpi eq, %arg1, %c0_i32_8 : i32
    %10 = arith.extui %9 : i1 to i32
    %c0_i32_9 = arith.constant 0 : i32
    %11 = arith.cmpi ne, %10, %c0_i32_9 : i32
    scf.if %11 {
      %c0_10 = arith.constant 0 : index
      %c0_11 = arith.constant 0 : index
      %12 = vector.load %arg7[%c0_10, %c0_11] : memref<8x128xf32, #tpu.memory_space<vmem>>, vector<8x128xf32>
      %c0_12 = arith.constant 0 : index
      %c0_13 = arith.constant 0 : index
      %13 = vector.load %arg4[%c0_12, %c0_13] : memref<128x128xf32, #tpu.memory_space<vmem>>, vector<128x128xf32>
      %cst_14 = arith.constant dense<0.000000e+00> : vector<8x128xf32>
      %14 = tpu.matmul %12, %13, %cst_14 {dimension_numbers = #tpu.dot_dimension_numbers<[1], [0], [0], [1], [0, 0, 1, 1], [], []>} : vector<8x128xf32>, vector<128x128xf32>, vector<8x128xf32> -> vector<8x128xf32>
      %c0_15 = arith.constant 0 : index
      %c0_16 = arith.constant 0 : index
      %15 = vector.load %arg5[%c0_15, %c0_16] : memref<1x128xf32, #tpu.memory_space<vmem>>, vector<1x128xf32>
      %16 = vector.broadcast %15 : vector<1x128xf32> to vector<8x128xf32>
      %17 = arith.addf %14, %16 : vector<8x128xf32>
      %c0_17 = arith.constant 0 : index
      %c0_18 = arith.constant 0 : index
      %18 = vector.load %arg6[%c0_17, %c0_18] : memref<8x128xf32, #tpu.memory_space<vmem>>, vector<8x128xf32>
      tpu.vector_store %arg6[%c0_17, %c0_18], %17 {strides = array<i32>} : memref<8x128xf32, #tpu.memory_space<vmem>>, vector<8x128xf32>,
    } else {
    }
    return
  }
  func.func @transform_0(%arg0: i32, %arg1: i32) -> (i32, i32) {
    %c0_i32 = arith.constant 0 : i32
    return %arg0, %arg1 : i32, i32
  }
  func.func @transform_1(%arg0: i32, %arg1: i32) -> (i32, i32) {
    %c0_i32 = arith.constant 0 : i32
    %c0_i32_0 = arith.constant 0 : i32
    return %arg1, %c0_i32 : i32, i32
  }
  func.func @transform_2(%arg0: i32, %arg1: i32) -> (i32, i32) {
    %c0_i32 = arith.constant 0 : i32
    %c0_i32_0 = arith.constant 0 : i32
    %c0_i32_1 = arith.constant 0 : i32
    return %c0_i32, %c0_i32_0 : i32, i32
  }
  func.func @transform_3(%arg0: i32, %arg1: i32) -> (i32, i32) {
    %c0_i32 = arith.constant 0 : i32
    %c0_i32_0 = arith.constant 0 : i32
    %c0_i32_1 = arith.constant 0 : i32
    return %c0_i32, %c0_i32_0 : i32, i32
  }
  func.func @transform_4(%arg0: i32, %arg1: i32) -> (i32, i32) {
    %c0_i32 = arith.constant 0 : i32
    %c0_i32_0 = arith.constant 0 : i32
    return %arg0, %c0_i32 : i32, i32
  }
}

</mosaic_0001>

<llo_original>
// kernel: tpu_custom_call.1
$region0: #{tpu_custom_call.1}
  #allocation0 [shape = 'u32[]', space=smem, size = 0x4, offset = 0x4, fixed_abs, tag = 'smem constant byte address 0x4 - core index']
  #allocation1 [shape = 'u32[72,128]{1,0:T(1,128)}', space=vmem, size = 0x9000, scoped, tag = 'internal scratch']
  #allocation2 [shape = 'f32[8,128]{1,0:T(8,128)}', space=vmem, size = 0x1000, scoped, tag = 'scratch operand']
  %s0 = inlined_call_operand.hbm [shape: f32[8,8], index: 0, kind: input, shape index: {}]
  %s1 = inlined_call_operand.hbm [shape: f32[8,128], index: 1, kind: input, shape index: {}]
  %s2 = inlined_call_operand.hbm [shape: f32[128,128], index: 2, kind: input, shape index: {}]
  %s3 = inlined_call_operand.vmem [shape: f32[1,128], index: 3, kind: input, shape index: {}]
  %s4 = inlined_call_operand.hbm [shape: f32[8,128], index: 4, kind: output, shape index: {}]
  %s5 = sld [smem:[#allocation0]]
  $region46: #{tpu_custom_call.1} parent=0
    _
  %s7 = ssub.s32 1, %s5
  %s8 = scalar_select 0, %s7, %s5
  $region1: #{tpu_custom_call.1} parent=0
    #allocation3 [shape = 'u8[4096]{0}', space=vmem, size = 0x1000, scoped, tag = 'input window, operand 0, single buffered']
    #allocation4 [shape = 's32[1]{0}', space=sflag, size = 0x4, scoped, tag = 'scoped memory for tpu_custom_call.1']
    #allocation5 [shape = 's32[1]{0}', space=sflag, size = 0x4, scoped, tag = 'scoped memory for tpu_custom_call.1']
    #allocation6 [shape = 'u8[4096]{0}', space=vmem, size = 0x1000, scoped, tag = 'input window, operand 1, single buffered']
    #allocation7 [shape = 's32[1]{0}', space=sflag, size = 0x4, scoped, tag = 'scoped memory for tpu_custom_call.1']
    #allocation8 [shape = 'u8[65536]{0}', space=vmem, size = 0x10000, scoped, tag = 'input window, operand 2, single buffered']
    #allocation9 [shape = 'u8[4096]{0}', space=vmem, size = 0x1000, scoped, tag = 'output window, operand 0, single buffered']
    %9 = vsyncpa [#allocation4], 0
    %10 = vsyncpa [#allocation7], 0
    %11 = vsyncpa [#allocation5], 0
    // Predicated region
    $region2: #{tpu_custom_call.1} parent=1 // pred_check
      _
    $region3: #{tpu_custom_call.1} parent=1 // pred_check_branch
      %13 = sbr.rel (0) target = $region5
    $region4: #{tpu_custom_call.1} parent=1 // pred_region
      %15 = vsyncadd [#allocation4], 0
      %s17 = sshll.u32 %s0, 4
      %s18 = int_to_ptr.hbm [resolvable:$true] %s17
      %s19 = sshll.u32 [#allocation3], 4
      %s20 = int_to_ptr.vmem [resolvable:$true] %s19
      %22 = dma.hbm_to_vmem [thread:$0]  %s18, 128, %s20, [#allocation4]
    $region5: #{tpu_custom_call.1} parent=1 // pred_fallthru
      _
    // Predicated region
    $region6: #{tpu_custom_call.1} parent=1 // pred_check
      _
    $region7: #{tpu_custom_call.1} parent=1 // pred_check_branch
      %24 = sbr.rel (0) target = $region9
    $region8: #{tpu_custom_call.1} parent=1 // pred_region
      %26 = vsyncadd [#allocation7], 0
      %s28 = sshll.u32 %s1, 4
      %s29 = int_to_ptr.hbm [resolvable:$true] %s28
      %s30 = sshll.u32 [#allocation6], 4
      %s31 = int_to_ptr.vmem [resolvable:$true] %s30
      %33 = dma.hbm_to_vmem [thread:$0]  %s29, 128, %s31, [#allocation7]
    $region9: #{tpu_custom_call.1} parent=1 // pred_fallthru
      _
    // Predicated region
    $region10: #{tpu_custom_call.1} parent=1 // pred_check
      _
    $region11: #{tpu_custom_call.1} parent=1 // pred_check_branch
      %35 = sbr.rel (0) target = $region13
    $region12: #{tpu_custom_call.1} parent=1 // pred_region
      %37 = vsyncadd [#allocation7], 0
      %s38 = sshll.u32 %s2, 4
      %s39 = int_to_ptr.hbm [resolvable:$true] %s38
      %s40 = sshll.u32 [#allocation8], 4
      %s41 = int_to_ptr.vmem [resolvable:$true] %s40
      %46 = dma.hbm_to_vmem [thread:$0]  %s39, 2048, %s41, [#allocation7], 128, 128, 8
    $region13: #{tpu_custom_call.1} parent=1 // pred_fallthru
      _
    // Predicated region
    $region14: #{tpu_custom_call.1} parent=1 // pred_check
      _
    $region15: #{tpu_custom_call.1} parent=1 // pred_check_branch
      %48 = sbr.rel (0) target = $region17
    $region16: #{tpu_custom_call.1} parent=1 // pred_region
      _
    $region17: #{tpu_custom_call.1} parent=1 // pred_fallthru
      _
    // Predicated region
    $region18: #{tpu_custom_call.1} parent=1 // pred_check
      _
    $region19: #{tpu_custom_call.1} parent=1 // pred_check_branch
      %50 = sbr.rel (0) target = $region21
    $region20: #{tpu_custom_call.1} parent=1 // pred_region
      %52 = dma.done [#allocation4], 128
    $region21: #{tpu_custom_call.1} parent=1 // pred_fallthru
      _
    // Predicated region
    $region22: #{tpu_custom_call.1} parent=1 // pred_check
      _
    $region23: #{tpu_custom_call.1} parent=1 // pred_check_branch
      %54 = sbr.rel (0) target = $region25
    $region24: #{tpu_custom_call.1} parent=1 // pred_region
      %56 = dma.done [#allocation7], 128
    $region25: #{tpu_custom_call.1} parent=1 // pred_fallthru
      _
    // Predicated region
    $region26: #{tpu_custom_call.1} parent=1 // pred_check
      _
    $region27: #{tpu_custom_call.1} parent=1 // pred_check_branch
      %58 = sbr.rel (0) target = $region29
    $region28: #{tpu_custom_call.1} parent=1 // pred_region
      %60 = dma.done [#allocation7], 2048
    $region29: #{tpu_custom_call.1} parent=1 // pred_fallthru
      _
    %p61 = scmp.eq.s32.totalorder 0, 0
    // Predicated region
    $region30: #{tpu_custom_call.1} parent=1 // pred_check
      %p62 = pneg %p61
    $region31: #{tpu_custom_call.1} parent=1 // pred_check_branch
      %64 = sbr.rel (%p62) target = $region33
    $region32: #{tpu_custom_call.1} parent=1 // pred_region
      %65 = vst [vmem:[#allocation2] sm:$0xff] 0.0
    $region33: #{tpu_custom_call.1} parent=1 // pred_fallthru
      _
    %v66 = vld [vmem:[#allocation2] sm:$0xff]
    %v67 = vld [vmem:[#allocation3] sm:$0xff]
    %v68 = vld [vmem:[#allocation6] sm:$0xff]
    %vm69 = vcmask 64512
    %v71 = vsel %vm69, %v67, 0
    %73 = vmatpush.msra.mxu0 0.0
    %74 = vmatpush.msra.mxu0 0.0
    %75 = vmatpush.msra.mxu0 0.0
    %76 = vmatpush.msra.mxu0 0.0
    %77 = vmatpush.msra.mxu0 0.0
    %78 = vmatpush.msra.mxu0 0.0
    %79 = vmatpush.msra.mxu0 0.0
    %80 = vmatpush.msra.mxu0 0.0
    %81 = vmatpush.msra.mxu0 0.0
    %82 = vmatpush.msra.mxu0 0.0
    %83 = vmatpush.msra.mxu0 0.0
    %84 = vmatpush.msra.mxu0 0.0
    %85 = vmatpush.msra.mxu0 0.0
    %86 = vmatpush.msra.mxu0 0.0
    %87 = vmatpush.msra.mxu0 0.0
    %88 = vmatpush.msra.mxu0 %v68
    %89 = vmatmul.f32.gmra.mxu0 %v71
    %v90 = vpop.f32.mrf.mxu0
    %v91 = vadd.f32 0.0, %v90
    %92 = vdwg.mxu0
    %v93 = vadd.f32 %v66, %v91
    %94 = vst [vmem:[#allocation2] sm:$0xff] %v93
    // Predicated region
    $region34: #{tpu_custom_call.1} parent=1 // pred_check
      %p95 = pneg %p61
    $region35: #{tpu_custom_call.1} parent=1 // pred_check_branch
      %97 = sbr.rel (%p95) target = $region37
    $region36: #{tpu_custom_call.1} parent=1 // pred_region
      %v98 = vld [vmem:[#allocation2] sm:$0xff]
      %v99 = vld [vmem:[#allocation8] sm:$0xff]
      %v100 = vld [vmem:[#allocation8 + $0x8] sm:$0xff]
      %v101 = vld [vmem:[#allocation8 + $0x10] sm:$0xff]
      %v102 = vld [vmem:[#allocation8 + $0x18] sm:$0xff]
      %v103 = vld [vmem:[#allocation8 + $0x20] sm:$0xff]
      %v104 = vld [vmem:[#allocation8 + $0x28] sm:$0xff]
      %v105 = vld [vmem:[#allocation8 + $0x30] sm:$0xff]
      %v106 = vld [vmem:[#allocation8 + $0x38] sm:$0xff]
      %v107 = vld [vmem:[#allocation8 + $0x40] sm:$0xff]
      %v108 = vld [vmem:[#allocation8 + $0x48] sm:$0xff]
      %v109 = vld [vmem:[#allocation8 + $0x50] sm:$0xff]
      %v110 = vld [vmem:[#allocation8 + $0x58] sm:$0xff]
      %v111 = vld [vmem:[#allocation8 + $0x60] sm:$0xff]
      %v112 = vld [vmem:[#allocation8 + $0x68] sm:$0xff]
      %v113 = vld [vmem:[#allocation8 + $0x70] sm:$0xff]
      %v114 = vld [vmem:[#allocation8 + $0x78] sm:$0xff]
      %v115 = vld [vmem:[%s3] sm:$0x1]
      %v117 = vperm.slane %v115, 0
      %119 = vmatpush.msra.mxu0 %v114
      %120 = vmatpush.msra.mxu0 %v113
      %121 = vmatpush.msra.mxu0 %v112
      %122 = vmatpush.msra.mxu0 %v111
      %123 = vmatpush.msra.mxu0 %v110
      %124 = vmatpush.msra.mxu0 %v109
      %125 = vmatpush.msra.mxu0 %v108
      %126 = vmatpush.msra.mxu0 %v107
      %127 = vmatpush.msra.mxu0 %v106
      %128 = vmatpush.msra.mxu0 %v105
      %129 = vmatpush.msra.mxu0 %v104
      %130 = vmatpush.msra.mxu0 %v103
      %131 = vmatpush.msra.mxu0 %v102
      %132 = vmatpush.msra.mxu0 %v101
      %133 = vmatpush.msra.mxu0 %v100
      %134 = vmatpush.msra.mxu0 %v99
      %135 = vmatmul.f32.gmra.mxu0 %v98
      %v136 = vpop.f32.mrf.mxu0
      %v137 = vadd.f32 %v117, %v136
      %138 = vdwg.mxu0
      %139 = vst [vmem:[#allocation9] sm:$0xff] %v137
    $region37: #{tpu_custom_call.1} parent=1 // pred_fallthru
      _
    // Predicated region
    $region38: #{tpu_custom_call.1} parent=1 // pred_check
      _
    $region39: #{tpu_custom_call.1} parent=1 // pred_check_branch
      %141 = sbr.rel (0) target = $region41
    $region40: #{tpu_custom_call.1} parent=1 // pred_region
      %143 = vsyncadd [#allocation5], 0
      %s145 = sshll.u32 [#allocation9], 4
      %s146 = int_to_ptr.vmem [resolvable:$true] %s145
      %s147 = sshll.u32 %s4, 4
      %s148 = int_to_ptr.hbm [resolvable:$true] %s147
      %150 = dma.vmem_to_hbm [thread:$0]  %s146, 128, %s148, [#allocation5]
    $region41: #{tpu_custom_call.1} parent=1 // pred_fallthru
      _
    // Predicated region
    $region42: #{tpu_custom_call.1} parent=1 // pred_check
      _
    $region43: #{tpu_custom_call.1} parent=1 // pred_check_branch
      %152 = sbr.rel (0) target = $region45
    $region44: #{tpu_custom_call.1} parent=1 // pred_region
      %154 = dma.done [#allocation5], 128
    $region45: #{tpu_custom_call.1} parent=1 // pred_fallthru
      _
    %155 = vsyncpa [#allocation4], 1
    %156 = vsyncpa [#allocation7], 1
    %157 = vsyncpa [#allocation5], 1

</llo_original>
